<compile_context>
chip_gen: v6e
topology: v6e:2x2x1
jax: 0.10.0
libtpu: 0.0.40
codegen_flags: <defaults>
</compile_context>

<pallas_src>
import jax
import jax.numpy as jnp
from jax.experimental import pallas as pl
from jax.experimental.pallas import tpu as pltpu

NUM_CLASSES = 2
LANES = 128          # lane-dense padded width for logits / probs outputs
_MIB = 1024 * 1024


def _round_up(x, m):
    return ((x + m - 1) // m) * m


def _layernorm(x, gamma, beta, eps=1e-5):
    mu = jnp.mean(x, axis=-1, keepdims=True)
    var = jnp.mean((x - mu) ** 2, axis=-1, keepdims=True)
    return (x - mu) * jax.lax.rsqrt(var + eps) * gamma + beta


# ----------------------------------------------------------------------------
# Fused kernel: feature_combiner + mean pooling + classifier head.
#
#   combined = cat([seq, dmr_expand], -1) @ W + b
#            = seq @ W_top + (dmr @ W_bot + b)       (dmr part precomputed)
#   pooled   = mean_S(combined) = mean_S(seq @ W_top) + dmr_proj
#   head     = Linear(H,256)+ReLU+LN -> Linear(256,64)+ReLU+LN -> Linear(64,2)
#   outputs  = combined (dmr_logits), logits, softmax(logits)
#
# Grid = (B // bb, S // ts); the S axis is a reduction for `pooled` (scratch
# accumulator + pl.when epilogue) and a pure streaming axis for `comb`.
# ----------------------------------------------------------------------------
def _make_fused_kernel(inv_seq_len):
    def fused_kernel(seq_ref, dmrp_ref, wtop_ref,
                     w1_ref, b1_ref, g1_ref, be1_ref,
                     w2_ref, b2_ref, g2_ref, be2_ref,
                     w3_ref, b3_ref,
                     comb_ref, logits_ref, probs_ref,
                     pooled_acc):
        s_idx = pl.program_id(1)
        bb, ts, H = seq_ref.shape

        @pl.when(s_idx == 0)
        def _():
            pooled_acc[...] = jnp.zeros_like(pooled_acc)

        # ---- feature combiner on this (bb, ts, H) tile ------------------------
        # seq arrives bf16; single large-M (bb*ts, H)@(H, H) MXU matmul, f32 acc.
        seq2d = seq_ref[...].reshape(bb * ts, H)
        part = jnp.dot(seq2d, wtop_ref[...],
                       preferred_element_type=jnp.float32).reshape(bb, ts, H)
        dmr = dmrp_ref[...]                                    # (bb, H) f32
        comb_ref[...] = (part + dmr[:, None, :]).astype(comb_ref.dtype)

        # ---- running sum for the mean over S (mean commutes with the dmr add) -
        pooled_acc[...] += jnp.sum(part, axis=1)

        # ---- classifier head + softmax: once per batch tile --------------------
        @pl.when(s_idx == pl.num_programs(1) - 1)
        def _():
            pooled = pooled_acc[...] * inv_seq_len + dmr       # (bb, H) f32
            h1 = jnp.maximum(
                jnp.dot(pooled, w1_ref[...],
                        preferred_element_type=jnp.float32) + b1_ref[...], 0.0)
            h1 = _layernorm(h1, g1_ref[...], be1_ref[...])     # (bb, 256)
            h2 = jnp.maximum(
                jnp.dot(h1, w2_ref[...],
                        preferred_element_type=jnp.float32) + b2_ref[...], 0.0)
            h2 = _layernorm(h2, g2_ref[...], be2_ref[...])     # (bb, 64)

            # final Linear(64,2) into a lane-dense padded (bb, 128) slab
            logits_pad = jnp.dot(h2, w3_ref[...],
                                 preferred_element_type=jnp.float32) + b3_ref[...]
            logits_ref[...] = logits_pad

            lane = jax.lax.broadcasted_iota(jnp.int32, logits_pad.shape, 1)
            valid = lane < NUM_CLASSES
            masked = jnp.where(valid, logits_pad, -jnp.inf)
            m = jnp.max(masked, axis=-1, keepdims=True)
            e = jnp.where(valid, jnp.exp(masked - m), 0.0)
            denom = jnp.sum(e, axis=-1, keepdims=True)
            probs_ref[...] = e * pl.reciprocal(denom, approx=True)

    return fused_kernel


# ----------------------------------------------------------------------------
# Tiling / VMEM sizing helpers.
# ----------------------------------------------------------------------------
def _vmem_budget_bytes():
    """~3/4 of physical VMEM: ~48 MiB on v7x, ~96 MiB on v5e/v6e."""
    cap = 64 * _MIB                       # conservative default (v7x physical)
    try:
        info = pltpu.get_tpu_info()
        cap = int(getattr(info, "vmem_capacity_bytes", cap)) or cap
    except Exception:
        pass
    return (3 * cap) // 4


def _vmem_need_bytes(bb, ts, H, seq_item, comb_item, invariant_bytes):
    # Pipelined (double-buffered) I/O blocks.
    io = bb * ts * H * (seq_item + comb_item)     # seq in + comb out
    io += bb * H * 4                              # dmr_proj (f32)
    io += 2 * bb * LANES * 4                      # logits + probs (f32)
    # In-kernel temporaries: f32 part_seq value + reshape/relayout slack,
    # head activations, pooled accumulator (single-buffered).
    temps = bb * ts * H * (4 + seq_item)
    temps += 2 * bb * (256 + 64 + 2 * LANES) * 4
    acc = bb * H * 4
    return 2 * io + temps + acc + invariant_bytes


def _pick_blocks(B, S_pad, H_pad, seq_item, comb_item, invariant_bytes, budget):
    """Pick (block_b, tile_s) that fits the VMEM budget.

    Preferences: >= 2 batch grid steps (v7x megacore), >= 4 total steps (real
    pipeline), large-M matmul per step (~1024 rows for the MXU), then bigger
    tiles for fewer per-step overheads.
    """
    bb_cands = [d for d in range(1, B + 1)
                if B % d == 0 and (d % 8 == 0 or d == B)]
    ts_cands = sorted({d for d in range(8, S_pad + 1, 8) if S_pad % d == 0}
                      | {S_pad})
    best = None
    for bb in bb_cands:
        for ts in ts_cands:
            need = _vmem_need_bytes(bb, ts, H_pad, seq_item, comb_item,
                                    invariant_bytes)
            if need > budget:
                continue
            score = (
                1 if (B // bb) >= 2 else 0,                   # feed both v7x TCs
                1 if (B // bb) * (S_pad // ts) >= 4 else 0,   # keep a pipeline
                min(bb * ts, 1024),                           # large-M MXU matmul
                bb * ts,                                      # then fewer steps
            )
            if best is None or score > best[0]:
                best = (score, bb, ts, need)
    if best is None:
        # Nothing fits the estimate: take the smallest legal tile and let
        # vmem_limit_bytes rise to the budget (only reachable at absurd shapes).
        bb, ts = min(bb_cands), min(ts_cands)
        need = _vmem_need_bytes(bb, ts, H_pad, seq_item, comb_item,
                                invariant_bytes)
        best = ((0, 0, 0, 0), bb, ts, need)
    _, bb, ts, need = best
    return bb, ts, need


def _invariant_spec(arr):
    zeros = (0,) * arr.ndim
    idx = lambda b, s, _z=zeros: _z           # default-arg capture (no late binding)
    try:
        # Grid-invariant weights never change across steps -> single VMEM buffer.
        return pl.BlockSpec(arr.shape, idx, pipeline_mode=pl.Buffered(1))
    except Exception:
        return pl.BlockSpec(arr.shape, idx)   # fallback: default double-buffering


# ----------------------------------------------------------------------------
# pallas_call wrapper (expects padded, aligned inputs).
# ----------------------------------------------------------------------------
def fused_combiner_head(seq_pad, dmr_proj_pad, w_top_pad,
                        w1, b1, g1, be1, w2, b2, g2, be2, w3p, b3p,
                        *, seq_len, comb_dtype=jnp.bfloat16):
    B, S_pad, H_pad = seq_pad.shape
    invariants = (w_top_pad, w1, b1, g1, be1, w2, b2, g2, be2, w3p, b3p)
    # Conservative: count two buffers even if Buffered(1) is honored.
    invariant_bytes = 2 * sum(int(a.size) * a.dtype.itemsize for a in invariants)

    budget = _vmem_budget_bytes()
    bb, ts, need = _pick_blocks(B, S_pad, H_pad,
                                seq_pad.dtype.itemsize,
                                jnp.dtype(comb_dtype).itemsize,
                                invariant_bytes, budget)
    grid = (B // bb, S_pad // ts)
    vmem_limit = int(min(max(int(need * 1.25), 8 * _MIB), budget))

    in_specs = [
        pl.BlockSpec((bb, ts, H_pad), lambda b, s: (b, s, 0)),
        pl.BlockSpec((bb, H_pad), lambda b, s: (b, 0)),
    ] + [_invariant_spec(a) for a in invariants]

    out_specs = [
        pl.BlockSpec((bb, ts, H_pad), lambda b, s: (b, s, 0)),
        pl.BlockSpec((bb, LANES), lambda b, s: (b, 0)),
        pl.BlockSpec((bb, LANES), lambda b, s: (b, 0)),
    ]

    out_shape = (
        jax.ShapeDtypeStruct((B, S_pad, H_pad), comb_dtype),
        jax.ShapeDtypeStruct((B, LANES), jnp.float32),
        jax.ShapeDtypeStruct((B, LANES), jnp.float32),
    )

    # Advisory cost estimate for XLA's scheduler around the custom call.
    flops = (2 * B * S_pad * H_pad * H_pad
             + 2 * B * (H_pad * 256 + 256 * 64 + 64 * LANES))
    bytes_accessed = (
        seq_pad.size * seq_pad.dtype.itemsize
        + B * S_pad * H_pad * jnp.dtype(comb_dtype).itemsize
        + dmr_proj_pad.size * dmr_proj_pad.dtype.itemsize
        + sum(int(a.size) * a.dtype.itemsize for a in invariants)
        + 2 * B * LANES * 4)
    cost = pl.CostEstimate(flops=int(flops),
                           transcendentals=int(B * (LANES + 8)),
                           bytes_accessed=int(bytes_accessed))

    kernel = _make_fused_kernel(1.0 / float(seq_len))

    comb, logits_pad, probs_pad = pl.pallas_call(
        kernel,
        out_shape=out_shape,
        grid=grid,
        in_specs=in_specs,
        out_specs=out_specs,
        scratch_shapes=[pltpu.VMEM((bb, H_pad), jnp.float32)],
        compiler_params=pltpu.CompilerParams(
            dimension_semantics=("parallel", "arbitrary"),
            vmem_limit_bytes=vmem_limit),
        cost_estimate=cost,
    )(seq_pad, dmr_proj_pad, *invariants)
    return comb, logits_pad, probs_pad


# ----------------------------------------------------------------------------
# Full forward (post-BERT) matching ReadClassifier.forward semantics.
# ----------------------------------------------------------------------------
def read_classifier_forward(sequence_output, dmr_id, params,
                            matmul_dtype=jnp.bfloat16,
                            comb_dtype=jnp.bfloat16):
    """sequence_output: (B,S,H) f32 ; dmr_id: (B,) i32."""
    B, S, H = sequence_output.shape

    # Embedding gather (data-dependent) + the dmr half of the combiner, hoisted
    # out of the grid: one (B,H)@(H,H) matmul instead of per-tile M=1 MXU work.
    emb_table = params["dmr_embedding"]                          # (num_dmrs, H)
    dmr_encoded = jnp.take(emb_table, dmr_id, axis=0)            # (B, H)
    w_top = params["fc_w"][:H, :]                                # (H, H)
    w_bot = params["fc_w"][H:, :]                                # (H, H)
    dmr_proj = (jnp.dot(dmr_encoded, w_bot,
                        preferred_element_type=jnp.float32)
                + params["fc_b"]).astype(jnp.float32)            # (B, H)

    # Pad to TPU-friendly shapes: S -> multiple of 8, H -> multiple of 128.
    # Padding is zeros, so matmuls / mean / head are exact on the original slice
    # (no-op at production BERT sizes where H is already a multiple of 128).
    S_pad = _round_up(S, 8)
    H_pad = _round_up(H, LANES)
    pad_s, pad_h = S_pad - S, H_pad - H

    seq_p = sequence_output
    if pad_s or pad_h:
        seq_p = jnp.pad(seq_p, ((0, 0), (0, pad_s), (0, pad_h)))
    seq_p = seq_p.astype(matmul_dtype)       # bf16 operand halves the HBM read

    if pad_h:
        dmr_proj = jnp.pad(dmr_proj, ((0, 0), (0, pad_h)))
        w_top = jnp.pad(w_top, ((0, pad_h), (0, pad_h)))
        w1 = jnp.pad(params["w1"], ((0, pad_h), (0, 0)))
    else:
        w1 = params["w1"]
    w_top = w_top.astype(matmul_dtype)

    # Final 64->2 weights padded to a lane-dense 128-wide slab.
    w3p = jnp.zeros((64, LANES), jnp.float32).at[:, :NUM_CLASSES].set(params["w3"])
    b3p = jnp.zeros((1, LANES), jnp.float32).at[:, :NUM_CLASSES].set(params["b3"])

    comb_p, logits_pad, probs_pad = fused_combiner_head(
        seq_p, dmr_proj, w_top,
        w1, params["b1"], params["g1"], params["be1"],
        params["w2"], params["b2"], params["g2"], params["be2"],
        w3p, b3p, seq_len=S, comb_dtype=comb_dtype)

    comb = comb_p[:, :S, :H]                 # dmr_logits (bf16 writeback)
    logits = logits_pad[:, :NUM_CLASSES]
    probs = probs_pad[:, :NUM_CLASSES]
    return {"logits": logits,
            "dmr_logits": comb,
            "classification_logits": probs}


# ----------------------------------------------------------------------------
# Parameter init + pure-JAX f32 reference (for tolerance verification).
# ----------------------------------------------------------------------------
def init_params(key, num_dmrs, H):
    ks = jax.random.split(key, 5)

    def lin(k, fi, fo):
        s = 1.0 / jnp.sqrt(fi)
        kw, kb = jax.random.split(k)
        w = jax.random.uniform(kw, (fi, fo), jnp.float32, -s, s)
        b = jax.random.uniform(kb, (1, fo), jnp.float32, -s, s)
        return w, b

    fc_w, fc_b = lin(ks[0], 2 * H, H)
    w1, b1 = lin(ks[1], H, 256)
    w2, b2 = lin(ks[2], 256, 64)
    w3, b3 = lin(ks[3], 64, NUM_CLASSES)
    return {
        "dmr_embedding": jax.random.normal(ks[4], (num_dmrs, H), jnp.float32),
        "fc_w": fc_w, "fc_b": fc_b,
        "w1": w1, "b1": b1,
        "g1": jnp.ones((1, 256), jnp.float32), "be1": jnp.zeros((1, 256), jnp.float32),
        "w2": w2, "b2": b2,
        "g2": jnp.ones((1, 64), jnp.float32), "be2": jnp.zeros((1, 64), jnp.float32),
        "w3": w3, "b3": b3,
    }


def reference_forward(sequence_output, dmr_id, params):
    B, S, H = sequence_output.shape
    emb = jnp.take(params["dmr_embedding"], dmr_id, axis=0)       # (B, H)
    dmr_expand = jnp.broadcast_to(emb[:, None, :], (B, S, H))
    combined_in = jnp.concatenate([sequence_output, dmr_expand], axis=-1)
    comb = combined_in @ params["fc_w"] + params["fc_b"]
    pooled = comb.mean(axis=1)
    h1 = jax.nn.relu(pooled @ params["w1"] + params["b1"])
    h1 = _layernorm(h1, params["g1"], params["be1"])
    h2 = jax.nn.relu(h1 @ params["w2"] + params["b2"])
    h2 = _layernorm(h2, params["g2"], params["be2"])
    logits = h2 @ params["w3"] + params["b3"]
    return {"logits": logits,
            "dmr_logits": comb,
            "classification_logits": jax.nn.softmax(logits, axis=-1)}


if __name__ == "__main__":
    key = jax.random.PRNGKey(0)
    B, S, H, NUM_DMRS = 2, 8, 32, 16

    k_seq, k_dmr, k_par = jax.random.split(key, 3)
    sequence_output = jax.random.normal(k_seq, (B, S, H), jnp.float32)
    dmr_id_arr = jax.random.randint(k_dmr, (B,), 0, NUM_DMRS, jnp.int32)
    params = init_params(k_par, NUM_DMRS, H)

    out = jax.jit(read_classifier_forward)(sequence_output, dmr_id_arr, params)
    jax.block_until_ready(out)

    assert out["logits"].shape == (B, NUM_CLASSES)
    assert out["dmr_logits"].shape == (B, S, H)
    assert out["classification_logits"].shape == (B, NUM_CLASSES)

    # Numerical check vs. pure-JAX f32 reference (bf16 matmul operands and bf16
    # dmr_logits writeback -> loose tolerance; all accumulation is f32).
    ref = reference_forward(sequence_output, dmr_id_arr, params)
    for name in ("logits", "dmr_logits", "classification_logits"):
        assert bool(jnp.allclose(out[name].astype(jnp.float32), ref[name],
                                 atol=5e-2, rtol=5e-2)), f"mismatch in {name}"

    print("KERNEL_OK")
</pallas_src>

<mosaic_0001>
module attributes {stable_mosaic.version = 11 : i64} {
  func.func @fused_kernel(%arg0: i32, %arg1: i32, %arg2: memref<2x8x128xbf16, #tpu.memory_space<vmem>>, %arg3: memref<2x128xf32, #tpu.memory_space<vmem>>, %arg4: memref<128x128xbf16, #tpu.memory_space<vmem>>, %arg5: memref<128x256xf32, #tpu.memory_space<vmem>>, %arg6: memref<1x256xf32, #tpu.memory_space<vmem>>, %arg7: memref<1x256xf32, #tpu.memory_space<vmem>>, %arg8: memref<1x256xf32, #tpu.memory_space<vmem>>, %arg9: memref<256x64xf32, #tpu.memory_space<vmem>>, %arg10: memref<1x64xf32, #tpu.memory_space<vmem>>, %arg11: memref<1x64xf32, #tpu.memory_space<vmem>>, %arg12: memref<1x64xf32, #tpu.memory_space<vmem>>, %arg13: memref<64x128xf32, #tpu.memory_space<vmem>>, %arg14: memref<1x128xf32, #tpu.memory_space<vmem>>, %arg15: memref<2x8x128xbf16, #tpu.memory_space<vmem>>, %arg16: memref<2x128xf32, #tpu.memory_space<vmem>>, %arg17: memref<2x128xf32, #tpu.memory_space<vmem>>, %arg18: memref<2x128xf32, #tpu.memory_space<vmem>>) attributes {dimension_semantics = [#tpu.dimension_semantics<parallel>, #tpu.dimension_semantics<arbitrary>], iteration_bounds = array<i64: 1, 1>, scalar_prefetch = 0 : i64, scratch_operands = 1 : i64, tpu.core_type = #tpu.core_type<tc>, window_params = [{transform_indices = @transform_0, window_bounds = array<i64: 2, 8, 128>}, {transform_indices = @transform_1, window_bounds = array<i64: 2, 128>}, {pipeline_mode = #tpu.pipeline_mode<synchronous>, transform_indices = @transform_2, window_bounds = array<i64: 128, 128>}, {pipeline_mode = #tpu.pipeline_mode<synchronous>, transform_indices = @transform_3, window_bounds = array<i64: 128, 256>}, {pipeline_mode = #tpu.pipeline_mode<synchronous>, transform_indices = @transform_4, window_bounds = array<i64: 1, 256>}, {pipeline_mode = #tpu.pipeline_mode<synchronous>, transform_indices = @transform_5, window_bounds = array<i64: 1, 256>}, {pipeline_mode = #tpu.pipeline_mode<synchronous>, transform_indices = @transform_6, window_bounds = array<i64: 1, 256>}, {pipeline_mode = #tpu.pipeline_mode<synchronous>, transform_indices = @transform_7, window_bounds = array<i64: 256, 64>}, {pipeline_mode = #tpu.pipeline_mode<synchronous>, transform_indices = @transform_8, window_bounds = array<i64: 1, 64>}, {pipeline_mode = #tpu.pipeline_mode<synchronous>, transform_indices = @transform_9, window_bounds = array<i64: 1, 64>}, {pipeline_mode = #tpu.pipeline_mode<synchronous>, transform_indices = @transform_10, window_bounds = array<i64: 1, 64>}, {pipeline_mode = #tpu.pipeline_mode<synchronous>, transform_indices = @transform_11, window_bounds = array<i64: 64, 128>}, {pipeline_mode = #tpu.pipeline_mode<synchronous>, transform_indices = @transform_12, window_bounds = array<i64: 1, 128>}, {transform_indices = @transform_13, window_bounds = array<i64: 2, 8, 128>}, {transform_indices = @transform_14, window_bounds = array<i64: 2, 128>}, {transform_indices = @transform_15, window_bounds = array<i64: 2, 128>}]} {
    %c0_i32 = arith.constant 0 : i32
    %0 = arith.cmpi eq, %arg1, %c0_i32 : i32
    %1 = arith.extui %0 : i1 to i32
    %c0_i32_0 = arith.constant 0 : i32
    %2 = arith.cmpi ne, %1, %c0_i32_0 : i32
    scf.if %2 {
      %cst_17 = arith.constant 0.000000e+00 : f32
      %21 = vector.broadcast %cst_17 : f32 to vector<2x128xf32>
      %c0_18 = arith.constant 0 : index
      %c0_19 = arith.constant 0 : index
      %22 = vector.load %arg18[%c0_18, %c0_19] : memref<2x128xf32, #tpu.memory_space<vmem>>, vector<2x128xf32>
      tpu.vector_store %arg18[%c0_18, %c0_19], %21 {strides = array<i32>} : memref<2x128xf32, #tpu.memory_space<vmem>>, vector<2x128xf32>,
    } else {
    }
    %c0 = arith.constant 0 : index
    %c0_1 = arith.constant 0 : index
    %c0_2 = arith.constant 0 : index
    %3 = vector.load %arg2[%c0, %c0_1, %c0_2] : memref<2x8x128xbf16, #tpu.memory_space<vmem>>, vector<2x8x128xbf16>
    %4 = vector.shape_cast %3 : vector<2x8x128xbf16> to vector<16x128xbf16>
    %c0_3 = arith.constant 0 : index
    %c0_4 = arith.constant 0 : index
    %5 = vector.load %arg4[%c0_3, %c0_4] : memref<128x128xbf16, #tpu.memory_space<vmem>>, vector<128x128xbf16>
    %cst = arith.constant dense<0.000000e+00> : vector<16x128xf32>
    %6 = tpu.matmul %4, %5, %cst {dimension_numbers = #tpu.dot_dimension_numbers<[1], [0], [0], [1], [0, 0, 1, 1], [], []>} : vector<16x128xbf16>, vector<128x128xbf16>, vector<16x128xf32> -> vector<16x128xf32>
    %7 = vector.shape_cast %6 : vector<16x128xf32> to vector<2x8x128xf32>
    %c0_5 = arith.constant 0 : index
    %c0_6 = arith.constant 0 : index
    %8 = vector.load %arg3[%c0_5, %c0_6] : memref<2x128xf32, #tpu.memory_space<vmem>>, vector<2x128xf32>
    %9 = vector.shape_cast %8 : vector<2x128xf32> to vector<2x1x128xf32>
    %10 = vector.broadcast %9 : vector<2x1x128xf32> to vector<2x8x128xf32>
    %11 = arith.addf %7, %10 : vector<2x8x128xf32>
    %12 = arith.truncf %11 : vector<2x8x128xf32> to vector<2x8x128xbf16>
    %c0_7 = arith.constant 0 : index
    %c0_8 = arith.constant 0 : index
    %c0_9 = arith.constant 0 : index
    %13 = vector.load %arg15[%c0_7, %c0_8, %c0_9] : memref<2x8x128xbf16, #tpu.memory_space<vmem>>, vector<2x8x128xbf16>
    tpu.vector_store %arg15[%c0_7, %c0_8, %c0_9], %12 {strides = array<i32>} : memref<2x8x128xbf16, #tpu.memory_space<vmem>>, vector<2x8x128xbf16>,
    %c0_10 = arith.constant 0 : index
    %c0_11 = arith.constant 0 : index
    %14 = vector.load %arg18[%c0_10, %c0_11] : memref<2x128xf32, #tpu.memory_space<vmem>>, vector<2x128xf32>
    %cst_12 = arith.constant dense<0.000000e+00> : vector<2x128xf32>
    %15 = vector.multi_reduction <add>, %7, %cst_12 [1] : vector<2x8x128xf32> to vector<2x128xf32>
    %16 = arith.addf %14, %15 : vector<2x128xf32>
    %c0_13 = arith.constant 0 : index
    %c0_14 = arith.constant 0 : index
    %17 = vector.load %arg18[%c0_13, %c0_14] : memref<2x128xf32, #tpu.memory_space<vmem>>, vector<2x128xf32>
    tpu.vector_store %arg18[%c0_13, %c0_14], %16 {strides = array<i32>} : memref<2x128xf32, #tpu.memory_space<vmem>>, vector<2x128xf32>,
    %c0_i32_15 = arith.constant 0 : i32
    %18 = arith.cmpi eq, %arg1, %c0_i32_15 : i32
    %19 = arith.extui %18 : i1 to i32
    %c0_i32_16 = arith.constant 0 : i32
    %20 = arith.cmpi ne, %19, %c0_i32_16 : i32
    scf.if %20 {
      %c0_17 = arith.constant 0 : index
      %c0_18 = arith.constant 0 : index
      %21 = vector.load %arg18[%c0_17, %c0_18] : memref<2x128xf32, #tpu.memory_space<vmem>>, vector<2x128xf32>
      %cst_19 = arith.constant 1.250000e-01 : f32
      %22 = vector.broadcast %cst_19 : f32 to vector<2x128xf32>
      %23 = arith.mulf %21, %22 : vector<2x128xf32>
      %24 = arith.addf %23, %8 : vector<2x128xf32>
      %c0_20 = arith.constant 0 : index
      %c0_21 = arith.constant 0 : index
      %25 = vector.load %arg5[%c0_20, %c0_21] : memref<128x256xf32, #tpu.memory_space<vmem>>, vector<128x256xf32>
      %cst_22 = arith.constant dense<0.000000e+00> : vector<2x256xf32>
      %26 = tpu.matmul %24, %25, %cst_22 {dimension_numbers = #tpu.dot_dimension_numbers<[1], [0], [0], [1], [0, 0, 1, 1], [], []>} : vector<2x128xf32>, vector<128x256xf32>, vector<2x256xf32> -> vector<2x256xf32>
      %c0_23 = arith.constant 0 : index
      %c0_24 = arith.constant 0 : index
      %27 = vector.load %arg6[%c0_23, %c0_24] : memref<1x256xf32, #tpu.memory_space<vmem>>, vector<1x256xf32>
      %28 = vector.broadcast %27 : vector<1x256xf32> to vector<2x256xf32>
      %29 = arith.addf %26, %28 : vector<2x256xf32>
      %cst_25 = arith.constant 0.000000e+00 : f32
      %30 = vector.broadcast %cst_25 : f32 to vector<2x256xf32>
      %31 = arith.maximumf %29, %30 : vector<2x256xf32>
      %c0_26 = arith.constant 0 : index
      %c0_27 = arith.constant 0 : index
      %32 = vector.load %arg7[%c0_26, %c0_27] : memref<1x256xf32, #tpu.memory_space<vmem>>, vector<1x256xf32>
      %c0_28 = arith.constant 0 : index
      %c0_29 = arith.constant 0 : index
      %33 = vector.load %arg8[%c0_28, %c0_29] : memref<1x256xf32, #tpu.memory_space<vmem>>, vector<1x256xf32>
      %cst_30 = arith.constant dense<0.000000e+00> : vector<2xf32>
      %34 = vector.multi_reduction <add>, %31, %cst_30 [1] : vector<2x256xf32> to vector<2xf32>
      %35 = vector.shape_cast %34 : vector<2xf32> to vector<2x1xf32>
      %cst_31 = arith.constant 2.560000e+02 : f32
      %36 = vector.broadcast %cst_31 : f32 to vector<2x1xf32>
      %37 = arith.divf %35, %36 : vector<2x1xf32>
      %38 = vector.broadcast %37 : vector<2x1xf32> to vector<2x256xf32>
      %39 = arith.subf %31, %38 : vector<2x256xf32>
      %40 = arith.mulf %39, %39 : vector<2x256xf32>
      %cst_32 = arith.constant dense<0.000000e+00> : vector<2xf32>
      %41 = vector.multi_reduction <add>, %40, %cst_32 [1] : vector<2x256xf32> to vector<2xf32>
      %42 = vector.shape_cast %41 : vector<2xf32> to vector<2x1xf32>
      %cst_33 = arith.constant 2.560000e+02 : f32
      %43 = vector.broadcast %cst_33 : f32 to vector<2x1xf32>
      %44 = arith.divf %42, %43 : vector<2x1xf32>
      %45 = vector.broadcast %37 : vector<2x1xf32> to vector<2x256xf32>
      %46 = arith.subf %31, %45 : vector<2x256xf32>
      %cst_34 = arith.constant 9.99999974E-6 : f32
      %47 = vector.broadcast %cst_34 : f32 to vector<2x1xf32>
      %48 = arith.addf %44, %47 : vector<2x1xf32>
      %49 = math.rsqrt %48 : vector<2x1xf32>
      %50 = vector.broadcast %49 : vector<2x1xf32> to vector<2x256xf32>
      %51 = arith.mulf %46, %50 : vector<2x256xf32>
      %52 = vector.broadcast %32 : vector<1x256xf32> to vector<2x256xf32>
      %53 = arith.mulf %51, %52 : vector<2x256xf32>
      %54 = vector.broadcast %33 : vector<1x256xf32> to vector<2x256xf32>
      %55 = arith.addf %53, %54 : vector<2x256xf32>
      %c0_35 = arith.constant 0 : index
      %c0_36 = arith.constant 0 : index
      %56 = vector.load %arg9[%c0_35, %c0_36] : memref<256x64xf32, #tpu.memory_space<vmem>>, vector<256x64xf32>
      %cst_37 = arith.constant dense<0.000000e+00> : vector<2x64xf32>
      %57 = tpu.matmul %55, %56, %cst_37 {dimension_numbers = #tpu.dot_dimension_numbers<[1], [0], [0], [1], [0, 0, 1, 1], [], []>} : vector<2x256xf32>, vector<256x64xf32>, vector<2x64xf32> -> vector<2x64xf32>
      %c0_38 = arith.constant 0 : index
      %c0_39 = arith.constant 0 : index
      %58 = vector.load %arg10[%c0_38, %c0_39] : memref<1x64xf32, #tpu.memory_space<vmem>>, vector<1x64xf32>
      %59 = vector.broadcast %58 : vector<1x64xf32> to vector<2x64xf32>
      %60 = arith.addf %57, %59 : vector<2x64xf32>
      %cst_40 = arith.constant 0.000000e+00 : f32
      %61 = vector.broadcast %cst_40 : f32 to vector<2x64xf32>
      %62 = arith.maximumf %60, %61 : vector<2x64xf32>
      %c0_41 = arith.constant 0 : index
      %c0_42 = arith.constant 0 : index
      %63 = vector.load %arg11[%c0_41, %c0_42] : memref<1x64xf32, #tpu.memory_space<vmem>>, vector<1x64xf32>
      %c0_43 = arith.constant 0 : index
      %c0_44 = arith.constant 0 : index
      %64 = vector.load %arg12[%c0_43, %c0_44] : memref<1x64xf32, #tpu.memory_space<vmem>>, vector<1x64xf32>
      %cst_45 = arith.constant dense<0.000000e+00> : vector<2xf32>
      %65 = vector.multi_reduction <add>, %62, %cst_45 [1] : vector<2x64xf32> to vector<2xf32>
      %66 = vector.shape_cast %65 : vector<2xf32> to vector<2x1xf32>
      %cst_46 = arith.constant 6.400000e+01 : f32
      %67 = vector.broadcast %cst_46 : f32 to vector<2x1xf32>
      %68 = arith.divf %66, %67 : vector<2x1xf32>
      %69 = vector.broadcast %68 : vector<2x1xf32> to vector<2x64xf32>
      %70 = arith.subf %62, %69 : vector<2x64xf32>
      %71 = arith.mulf %70, %70 : vector<2x64xf32>
      %cst_47 = arith.constant dense<0.000000e+00> : vector<2xf32>
      %72 = vector.multi_reduction <add>, %71, %cst_47 [1] : vector<2x64xf32> to vector<2xf32>
      %73 = vector.shape_cast %72 : vector<2xf32> to vector<2x1xf32>
      %cst_48 = arith.constant 6.400000e+01 : f32
      %74 = vector.broadcast %cst_48 : f32 to vector<2x1xf32>
      %75 = arith.divf %73, %74 : vector<2x1xf32>
      %76 = vector.broadcast %68 : vector<2x1xf32> to vector<2x64xf32>
      %77 = arith.subf %62, %76 : vector<2x64xf32>
      %cst_49 = arith.constant 9.99999974E-6 : f32
      %78 = vector.broadcast %cst_49 : f32 to vector<2x1xf32>
      %79 = arith.addf %75, %78 : vector<2x1xf32>
      %80 = math.rsqrt %79 : vector<2x1xf32>
      %81 = vector.broadcast %80 : vector<2x1xf32> to vector<2x64xf32>
      %82 = arith.mulf %77, %81 : vector<2x64xf32>
      %83 = vector.broadcast %63 : vector<1x64xf32> to vector<2x64xf32>
      %84 = arith.mulf %82, %83 : vector<2x64xf32>
      %85 = vector.broadcast %64 : vector<1x64xf32> to vector<2x64xf32>
      %86 = arith.addf %84, %85 : vector<2x64xf32>
      %c0_50 = arith.constant 0 : index
      %c0_51 = arith.constant 0 : index
      %87 = vector.load %arg13[%c0_50, %c0_51] : memref<64x128xf32, #tpu.memory_space<vmem>>, vector<64x128xf32>
      %cst_52 = arith.constant dense<0.000000e+00> : vector<2x128xf32>
      %88 = tpu.matmul %86, %87, %cst_52 {dimension_numbers = #tpu.dot_dimension_numbers<[1], [0], [0], [1], [0, 0, 1, 1], [], []>} : vector<2x64xf32>, vector<64x128xf32>, vector<2x128xf32> -> vector<2x128xf32>
      %c0_53 = arith.constant 0 : index
      %c0_54 = arith.constant 0 : index
      %89 = vector.load %arg14[%c0_53, %c0_54] : memref<1x128xf32, #tpu.memory_space<vmem>>, vector<1x128xf32>
      %90 = vector.broadcast %89 : vector<1x128xf32> to vector<2x128xf32>
      %91 = arith.addf %88, %90 : vector<2x128xf32>
      %c0_55 = arith.constant 0 : index
      %c0_56 = arith.constant 0 : index
      %92 = vector.load %arg16[%c0_55, %c0_56] : memref<2x128xf32, #tpu.memory_space<vmem>>, vector<2x128xf32>
      tpu.vector_store %arg16[%c0_55, %c0_56], %91 {strides = array<i32>} : memref<2x128xf32, #tpu.memory_space<vmem>>, vector<2x128xf32>,
      %93 = tpu.iota {dimensions = array<i32: 1>} : vector<2x128xi32>
      %c2_i32 = arith.constant 2 : i32
      %94 = vector.broadcast %c2_i32 : i32 to vector<2x128xi32>
      %95 = arith.cmpi slt, %93, %94 : vector<2x128xi32>
      %cst_57 = arith.constant 0xFF800000 : f32
      %96 = vector.broadcast %cst_57 : f32 to vector<2x128xf32>
      %97 = arith.select %95, %91, %96 : vector<2x128xi1>, vector<2x128xf32>
      %cst_58 = arith.constant dense<0xFF800000> : vector<2xf32>
      %98 = vector.multi_reduction <maximumf>, %97, %cst_58 [1] : vector<2x128xf32> to vector<2xf32>
      %99 = vector.shape_cast %98 : vector<2xf32> to vector<2x1xf32>
      %100 = vector.broadcast %99 : vector<2x1xf32> to vector<2x128xf32>
      %101 = arith.subf %97, %100 : vector<2x128xf32>
      %102 = math.exp %101 : vector<2x128xf32>
      %cst_59 = arith.constant 0.000000e+00 : f32
      %103 = vector.broadcast %cst_59 : f32 to vector<2x128xf32>
      %104 = arith.select %95, %102, %103 : vector<2x128xi1>, vector<2x128xf32>
      %cst_60 = arith.constant dense<0.000000e+00> : vector<2xf32>
      %105 = vector.multi_reduction <add>, %104, %cst_60 [1] : vector<2x128xf32> to vector<2xf32>
      %106 = vector.shape_cast %105 : vector<2xf32> to vector<2x1xf32>
      %107 = tpu.reciprocal %106 {approx = true} : vector<2x1xf32> -> vector<2x1xf32>
      %108 = vector.broadcast %107 : vector<2x1xf32> to vector<2x128xf32>
      %109 = arith.mulf %104, %108 : vector<2x128xf32>
      %c0_61 = arith.constant 0 : index
      %c0_62 = arith.constant 0 : index
      %110 = vector.load %arg17[%c0_61, %c0_62] : memref<2x128xf32, #tpu.memory_space<vmem>>, vector<2x128xf32>
      tpu.vector_store %arg17[%c0_61, %c0_62], %109 {strides = array<i32>} : memref<2x128xf32, #tpu.memory_space<vmem>>, vector<2x128xf32>,
    } else {
    }
    return
  }
  func.func @transform_0(%arg0: i32, %arg1: i32) -> (i32, i32, i32) {
    %c0_i32 = arith.constant 0 : i32
    %c0_i32_0 = arith.constant 0 : i32
    return %arg0, %arg1, %c0_i32 : i32, i32, i32
  }
  func.func @transform_1(%arg0: i32, %arg1: i32) -> (i32, i32) {
    %c0_i32 = arith.constant 0 : i32
    %c0_i32_0 = arith.constant 0 : i32
    return %arg0, %c0_i32 : i32, i32
  }
  func.func @transform_2(%arg0: i32, %arg1: i32) -> (i32, i32) {
    %c0_i32 = arith.constant 0 : i32
    %c0_i32_0 = arith.constant 0 : i32
    %c0_i32_1 = arith.constant 0 : i32
    return %c0_i32, %c0_i32_0 : i32, i32
  }
  func.func @transform_3(%arg0: i32, %arg1: i32) -> (i32, i32) {
    %c0_i32 = arith.constant 0 : i32
    %c0_i32_0 = arith.constant 0 : i32
    %c0_i32_1 = arith.constant 0 : i32
    return %c0_i32, %c0_i32_0 : i32, i32
  }
  func.func @transform_4(%arg0: i32, %arg1: i32) -> (i32, i32) {
    %c0_i32 = arith.constant 0 : i32
    %c0_i32_0 = arith.constant 0 : i32
    %c0_i32_1 = arith.constant 0 : i32
    return %c0_i32, %c0_i32_0 : i32, i32
  }
  func.func @transform_5(%arg0: i32, %arg1: i32) -> (i32, i32) {
    %c0_i32 = arith.constant 0 : i32
    %c0_i32_0 = arith.constant 0 : i32
    %c0_i32_1 = arith.constant 0 : i32
    return %c0_i32, %c0_i32_0 : i32, i32
  }
  func.func @transform_6(%arg0: i32, %arg1: i32) -> (i32, i32) {
    %c0_i32 = arith.constant 0 : i32
    %c0_i32_0 = arith.constant 0 : i32
    %c0_i32_1 = arith.constant 0 : i32
    return %c0_i32, %c0_i32_0 : i32, i32
  }
  func.func @transform_7(%arg0: i32, %arg1: i32) -> (i32, i32) {
    %c0_i32 = arith.constant 0 : i32
    %c0_i32_0 = arith.constant 0 : i32
    %c0_i32_1 = arith.constant 0 : i32
    return %c0_i32, %c0_i32_0 : i32, i32
  }
  func.func @transform_8(%arg0: i32, %arg1: i32) -> (i32, i32) {
    %c0_i32 = arith.constant 0 : i32
    %c0_i32_0 = arith.constant 0 : i32
    %c0_i32_1 = arith.constant 0 : i32
    return %c0_i32, %c0_i32_0 : i32, i32
  }
  func.func @transform_9(%arg0: i32, %arg1: i32) -> (i32, i32) {
    %c0_i32 = arith.constant 0 : i32
    %c0_i32_0 = arith.constant 0 : i32
    %c0_i32_1 = arith.constant 0 : i32
    return %c0_i32, %c0_i32_0 : i32, i32
  }
  func.func @transform_10(%arg0: i32, %arg1: i32) -> (i32, i32) {
    %c0_i32 = arith.constant 0 : i32
    %c0_i32_0 = arith.constant 0 : i32
    %c0_i32_1 = arith.constant 0 : i32
    return %c0_i32, %c0_i32_0 : i32, i32
  }
  func.func @transform_11(%arg0: i32, %arg1: i32) -> (i32, i32) {
    %c0_i32 = arith.constant 0 : i32
    %c0_i32_0 = arith.constant 0 : i32
    %c0_i32_1 = arith.constant 0 : i32
    return %c0_i32, %c0_i32_0 : i32, i32
  }
  func.func @transform_12(%arg0: i32, %arg1: i32) -> (i32, i32) {
    %c0_i32 = arith.constant 0 : i32
    %c0_i32_0 = arith.constant 0 : i32
    %c0_i32_1 = arith.constant 0 : i32
    return %c0_i32, %c0_i32_0 : i32, i32
  }
  func.func @transform_13(%arg0: i32, %arg1: i32) -> (i32, i32, i32) {
    %c0_i32 = arith.constant 0 : i32
    %c0_i32_0 = arith.constant 0 : i32
    return %arg0, %arg1, %c0_i32 : i32, i32, i32
  }
  func.func @transform_14(%arg0: i32, %arg1: i32) -> (i32, i32) {
    %c0_i32 = arith.constant 0 : i32
    %c0_i32_0 = arith.constant 0 : i32
    return %arg0, %c0_i32 : i32, i32
  }
  func.func @transform_15(%arg0: i32, %arg1: i32) -> (i32, i32) {
    %c0_i32 = arith.constant 0 : i32
    %c0_i32_0 = arith.constant 0 : i32
    return %arg0, %c0_i32 : i32, i32
  }
}

</mosaic_0001>

<llo_original>
// kernel: read_classifier_forward.1
$region0: #{read_classifier_forward.1}
  #allocation0 [shape = 'u32[]', space=smem, size = 0x4, offset = 0x4, fixed_abs, tag = 'smem constant byte address 0x4 - core index']
  #allocation1 [shape = 'u32[144,128]{1,0:T(1,128)}', space=vmem, size = 0x12000, scoped, tag = 'internal scratch']
  #allocation2 [shape = 'f32[2,128]{1,0:T(2,128)}', space=vmem, size = 0x400, scoped, tag = 'scratch operand']
  %s0 = inlined_call_operand.vmem [shape: bf16[2,8,128], index: 0, kind: input, shape index: {}]
  %s1 = inlined_call_operand.vmem [shape: f32[2,128], index: 1, kind: input, shape index: {}]
  %s2 = inlined_call_operand.vmem [shape: bf16[128,128], index: 2, kind: input, shape index: {}]
  %s3 = inlined_call_operand.vmem [shape: f32[128,256], index: 3, kind: input, shape index: {}]
  %s4 = inlined_call_operand.vmem [shape: f32[1,256], index: 4, kind: input, shape index: {}]
  %s5 = inlined_call_operand.vmem [shape: f32[1,256], index: 5, kind: input, shape index: {}]
  %s6 = inlined_call_operand.vmem [shape: f32[1,256], index: 6, kind: input, shape index: {}]
  %s7 = inlined_call_operand.vmem [shape: f32[256,64], index: 7, kind: input, shape index: {}]
  %s8 = inlined_call_operand.vmem [shape: f32[1,64], index: 8, kind: input, shape index: {}]
  %s9 = inlined_call_operand.vmem [shape: f32[1,64], index: 9, kind: input, shape index: {}]
  %s10 = inlined_call_operand.vmem [shape: f32[1,64], index: 10, kind: input, shape index: {}]
  %s11 = inlined_call_operand.vmem [shape: f32[64,128], index: 11, kind: input, shape index: {}]
  %s12 = inlined_call_operand.vmem [shape: f32[1,128], index: 12, kind: input, shape index: {}]
  %s13 = inlined_call_operand.hbm [shape: bf16[2,8,128], index: 13, kind: output, shape index: {0}]
  %s14 = inlined_call_operand.hbm [shape: f32[2,128], index: 14, kind: output, shape index: {1}]
  %s15 = inlined_call_operand.hbm [shape: f32[2,128], index: 15, kind: output, shape index: {2}]
  %16 = xla_tuple %s13, %s14, %s15
  %s17 = sld [smem:[#allocation0]]
  $region86: #{read_classifier_forward.1} parent=0
    _
  %s19 = ssub.s32 1, %s17
  %s20 = scalar_select 0, %s19, %s17
  $region1: #{read_classifier_forward.1} parent=0
    #allocation3 [shape = 'u8[4096]{0}', space=vmem, size = 0x1000, scoped, tag = 'output window, operand 0, single buffered']
    #allocation4 [shape = 's32[1]{0}', space=sflag, size = 0x4, scoped, tag = 'scoped memory for read_classifier_forward.1']
    #allocation5 [shape = 'u8[1024]{0}', space=vmem, size = 0x400, scoped, tag = 'output window, operand 1, single buffered']
    #allocation6 [shape = 's32[1]{0}', space=sflag, size = 0x4, scoped, tag = 'scoped memory for read_classifier_forward.1']
    #allocation7 [shape = 'u8[1024]{0}', space=vmem, size = 0x400, scoped, tag = 'output window, operand 2, single buffered']
    %21 = vsyncpa [#allocation4], 0
    %22 = vsyncpa [#allocation6], 0
    // Predicated region
    $region2: #{read_classifier_forward.1} parent=1 // pred_check
      _
    $region3: #{read_classifier_forward.1} parent=1 // pred_check_branch
      %24 = sbr.rel (0) target = $region5
    $region4: #{read_classifier_forward.1} parent=1 // pred_region
      _
    $region5: #{read_classifier_forward.1} parent=1 // pred_fallthru
      _
    // Predicated region
    $region6: #{read_classifier_forward.1} parent=1 // pred_check
      _
    $region7: #{read_classifier_forward.1} parent=1 // pred_check_branch
      %26 = sbr.rel (0) target = $region9
    $region8: #{read_classifier_forward.1} parent=1 // pred_region
      _
    $region9: #{read_classifier_forward.1} parent=1 // pred_fallthru
      _
    // Predicated region
    $region10: #{read_classifier_forward.1} parent=1 // pred_check
      _
    $region11: #{read_classifier_forward.1} parent=1 // pred_check_branch
      %28 = sbr.rel (0) target = $region13
    $region12: #{read_classifier_forward.1} parent=1 // pred_region
      _
    $region13: #{read_classifier_forward.1} parent=1 // pred_fallthru
      _
    // Predicated region
    $region14: #{read_classifier_forward.1} parent=1 // pred_check
      _
    $region15: #{read_classifier_forward.1} parent=1 // pred_check_branch
      %30 = sbr.rel (0) target = $region17
    $region16: #{read_classifier_forward.1} parent=1 // pred_region
      _
    $region17: #{read_classifier_forward.1} parent=1 // pred_fallthru
      _
    // Predicated region
    $region18: #{read_classifier_forward.1} parent=1 // pred_check
      _
    $region19: #{read_classifier_forward.1} parent=1 // pred_check_branch
      %32 = sbr.rel (0) target = $region21
    $region20: #{read_classifier_forward.1} parent=1 // pred_region
      _
    $region21: #{read_classifier_forward.1} parent=1 // pred_fallthru
      _
    // Predicated region
    $region22: #{read_classifier_forward.1} parent=1 // pred_check
      _
    $region23: #{read_classifier_forward.1} parent=1 // pred_check_branch
      %34 = sbr.rel (0) target = $region25
    $region24: #{read_classifier_forward.1} parent=1 // pred_region
      _
    $region25: #{read_classifier_forward.1} parent=1 // pred_fallthru
      _
    // Predicated region
    $region26: #{read_classifier_forward.1} parent=1 // pred_check
      _
    $region27: #{read_classifier_forward.1} parent=1 // pred_check_branch
      %36 = sbr.rel (0) target = $region29
    $region28: #{read_classifier_forward.1} parent=1 // pred_region
      _
    $region29: #{read_classifier_forward.1} parent=1 // pred_fallthru
      _
    // Predicated region
    $region30: #{read_classifier_forward.1} parent=1 // pred_check
      _
    $region31: #{read_classifier_forward.1} parent=1 // pred_check_branch
      %38 = sbr.rel (0) target = $region33
    $region32: #{read_classifier_forward.1} parent=1 // pred_region
      _
    $region33: #{read_classifier_forward.1} parent=1 // pred_fallthru
      _
    // Predicated region
    $region34: #{read_classifier_forward.1} parent=1 // pred_check
      _
    $region35: #{read_classifier_forward.1} parent=1 // pred_check_branch
      %40 = sbr.rel (0) target = $region37
    $region36: #{read_classifier_forward.1} parent=1 // pred_region
      _
    $region37: #{read_classifier_forward.1} parent=1 // pred_fallthru
      _
    // Predicated region
    $region38: #{read_classifier_forward.1} parent=1 // pred_check
      _
    $region39: #{read_classifier_forward.1} parent=1 // pred_check_branch
      %42 = sbr.rel (0) target = $region41
    $region40: #{read_classifier_forward.1} parent=1 // pred_region
      _
    $region41: #{read_classifier_forward.1} parent=1 // pred_fallthru
      _
    // Predicated region
    $region42: #{read_classifier_forward.1} parent=1 // pred_check
      _
    $region43: #{read_classifier_forward.1} parent=1 // pred_check_branch
      %44 = sbr.rel (0) target = $region45
    $region44: #{read_classifier_forward.1} parent=1 // pred_region
      _
    $region45: #{read_classifier_forward.1} parent=1 // pred_fallthru
      _
    // Predicated region
    $region46: #{read_classifier_forward.1} parent=1 // pred_check
      _
    $region47: #{read_classifier_forward.1} parent=1 // pred_check_branch
      %46 = sbr.rel (0) target = $region49
    $region48: #{read_classifier_forward.1} parent=1 // pred_region
      _
    $region49: #{read_classifier_forward.1} parent=1 // pred_fallthru
      _
    // Predicated region
    $region50: #{read_classifier_forward.1} parent=1 // pred_check
      _
    $region51: #{read_classifier_forward.1} parent=1 // pred_check_branch
      %48 = sbr.rel (0) target = $region53
    $region52: #{read_classifier_forward.1} parent=1 // pred_region
      _
    $region53: #{read_classifier_forward.1} parent=1 // pred_fallthru
      _
    %p50 = scmp.eq.s32.totalorder 0, 0
    // Predicated region
    $region54: #{read_classifier_forward.1} parent=1 // pred_check
      %p51 = pneg %p50
    $region55: #{read_classifier_forward.1} parent=1 // pred_check_branch
      %53 = sbr.rel (%p51) target = $region57
    $region56: #{read_classifier_forward.1} parent=1 // pred_region
      %54 = vst [vmem:[#allocation2] sm:$0x3] 0.0
    $region57: #{read_classifier_forward.1} parent=1 // pred_fallthru
      _
    %v55 = vld [vmem:[%s0] sm:$0xf]
    %v56 = vld [vmem:[%s0 + $0x4] sm:$0xf]
    %v57 = vld [vmem:[%s2] sm:$0xf]
    %v58 = vld [vmem:[%s2 + $0x4] sm:$0xf]
    %v59 = vld [vmem:[%s2 + $0x8] sm:$0xf]
    %v60 = vld [vmem:[%s2 + $0xc] sm:$0xf]
    %v61 = vld [vmem:[%s2 + $0x10] sm:$0xf]
    %v62 = vld [vmem:[%s2 + $0x14] sm:$0xf]
    %v63 = vld [vmem:[%s2 + $0x18] sm:$0xf]
    %v64 = vld [vmem:[%s2 + $0x1c] sm:$0xf]
    %v65 = vld [vmem:[%s2 + $0x20] sm:$0xf]
    %v66 = vld [vmem:[%s2 + $0x24] sm:$0xf]
    %v67 = vld [vmem:[%s2 + $0x28] sm:$0xf]
    %v68 = vld [vmem:[%s2 + $0x2c] sm:$0xf]
    %v69 = vld [vmem:[%s2 + $0x30] sm:$0xf]
    %v70 = vld [vmem:[%s2 + $0x34] sm:$0xf]
    %v71 = vld [vmem:[%s2 + $0x38] sm:$0xf]
    %v72 = vld [vmem:[%s2 + $0x3c] sm:$0xf]
    %v75 = vunpack.c.l.b16 %v55
    %v76 = vunpack.c.l.b16 %v56
    %v77 = vpack.c.b16 %v76, %v75
    %v95 = vunpack.c.l.b16 %v57
    %v96 = vunpack.c.l.b16 %v58
    %v97 = vunpack.c.l.b16 %v59
    %v98 = vunpack.c.l.b16 %v60
    %v99 = vunpack.c.l.b16 %v61
    %v100 = vunpack.c.l.b16 %v62
    %v101 = vunpack.c.l.b16 %v63
    %v102 = vunpack.c.l.b16 %v64
    %v103 = vunpack.c.l.b16 %v65
    %v104 = vunpack.c.l.b16 %v66
    %v105 = vunpack.c.l.b16 %v67
    %v106 = vunpack.c.l.b16 %v68
    %v107 = vunpack.c.l.b16 %v69
    %v108 = vunpack.c.l.b16 %v70
    %v109 = vunpack.c.l.b16 %v71
    %v110 = vunpack.c.l.b16 %v72
    %v111 = vpack.c.b16 %v96, %v95
    %v112 = vpack.c.b16 %v98, %v97
    %v113 = vpack.c.b16 %v100, %v99
    %v114 = vpack.c.b16 %v102, %v101
    %v115 = vpack.c.b16 %v104, %v103
    %v116 = vpack.c.b16 %v106, %v105
    %v117 = vpack.c.b16 %v108, %v107
    %v118 = vpack.c.b16 %v110, %v109
    %127 = vmatprep.subr.bf16.mxu0 0
    %128 = vmatpush1.bf16.msra.mxu0 %v118
    %129 = vmatprep.subr.bf16.mxu0 0
    %130 = vmatpush1.bf16.msra.mxu0 %v117
    %131 = vmatprep.subr.bf16.mxu0 0
    %132 = vmatpush1.bf16.msra.mxu0 %v116
    %133 = vmatprep.subr.bf16.mxu0 0
    %134 = vmatpush1.bf16.msra.mxu0 %v115
    %135 = vmatprep.subr.bf16.mxu0 0
    %136 = vmatpush1.bf16.msra.mxu0 %v114
    %137 = vmatprep.subr.bf16.mxu0 0
    %138 = vmatpush1.bf16.msra.mxu0 %v113
    %139 = vmatprep.subr.bf16.mxu0 0
    %140 = vmatpush1.bf16.msra.mxu0 %v112
    %141 = vmatprep.subr.bf16.mxu0 0
    %142 = vmatpush1.bf16.msra.mxu0 %v111
    %143 = vmatprep.subr.bf16.mxu0 0
    %144 = vmatpush2.bf16.msra.mxu0 0
    %145 = vmatprep.subr.bf16.mxu0 0
    %146 = vmatpush2.bf16.msra.mxu0 0
    %147 = vmatprep.subr.bf16.mxu0 0
    %148 = vmatpush2.bf16.msra.mxu0 0
    %149 = vmatprep.subr.bf16.mxu0 0
    %150 = vmatpush2.bf16.msra.mxu0 0
    %151 = vmatprep.subr.bf16.mxu0 0
    %152 = vmatpush2.bf16.msra.mxu0 0
    %153 = vmatprep.subr.bf16.mxu0 0
    %154 = vmatpush2.bf16.msra.mxu0 0
    %155 = vmatprep.subr.bf16.mxu0 0
    %156 = vmatpush2.bf16.msra.mxu0 0
    %157 = vmatprep.subr.bf16.mxu0 0
    %158 = vmatpush2.bf16.msra.mxu0 0
    %159 = vmatprep.mubr.bf16.mxu0 0
    %160 = vmatmul.mubr.bf16.gmra.mxu0 %v77
    %v161 = vpop.f32.mrf.mxu0
    %v162 = vadd.f32 0.0, %v161
    %v163 = vpop.f32.mrf.mxu0
    %v164 = vpop.f32.mrf.mxu0
    %v165 = vadd.f32 0.0, %v164
    %v166 = vpop.f32.mrf.mxu0
    %167 = vdwg.mxu0
    %v168 = vld [vmem:[%s1] sm:$0x3]
    %v171 = vunpack.c.l.s4 1966171168
    %v172 = vunpack.c.0.s8 %v171
    %v173 = vlaneseq
    %v174 = vshrl.u32 %v173, 7
    %v175 = vsub.s32 %v172, %v174
    %v176 = vrot.slane %v168, %v175
    %v177 = vcombine.high %v176, %v176
    %v179 = vunpack.c.l.s4 1966171168
    %v180 = vunpack.c.0.s8 %v179
    %v181 = vlaneseq
    %v182 = vshrl.u32 %v181, 7
    %v183 = vsub.s32 %v180, %v182
    %v184 = vrot.slane %v176, %v183
    %v186 = vunpack.c.l.s4 1966171168
    %v187 = vunpack.c.0.s8 %v186
    %v188 = vlaneseq
    %v189 = vshrl.u32 %v188, 7
    %v190 = vsub.s32 %v187, %v189
    %v191 = vrot.slane %v177, %v190
    %v192 = vlaneseq
    %v193 = vshrl.u32 %v192, 7
    %v194 = vsub.s32 0, %v193
    %v195 = vrot.slane %v184, %v194
    %v196 = vlaneseq
    %v197 = vshrl.u32 %v196, 7
    %v198 = vsub.s32 0, %v197
    %v199 = vrot.slane %v191, %v198
    %v202 = vadd.f32 %v162, %v195
    %v203 = vadd.f32 %v165, %v199
    %v204 = vpack.c.bf16 %v202, %v202
    %v205 = vpack.c.bf16 %v203, %v203
    %206 = vst [vmem:[#allocation3] sm:$0xf] %v204
    %207 = vst [vmem:[#allocation3 + $0x4] sm:$0xf] %v205
    %v208 = vld [vmem:[#allocation2] sm:$0x3]
    %v209 = vrot.slane %v162, 4
    %v210 = vadd.f32 %v162, %v209
    %v211 = vrot.slane %v210, 2
    %v212 = vadd.f32 %v210, %v211
    %v213 = vrot.slane %v212, 1
    %v214 = vadd.f32 %v212, %v213
    %v215 = vrot.slane %v165, 4
    %v216 = vadd.f32 %v165, %v215
    %v217 = vrot.slane %v216, 2
    %v218 = vadd.f32 %v216, %v217
    %v219 = vrot.slane %v218, 1
    %v220 = vadd.f32 %v218, %v219
    %vm223 = vcmask 1041409
    %v224 = vsel %vm223, %v220, %v214
    %v226 = vadd.f32 %v208, %v224
    %227 = vst [vmem:[#allocation2] sm:$0x3] %v226
    // Predicated region
    $region58: #{read_classifier_forward.1} parent=1 // pred_check
      %p228 = pneg %p50
    $region59: #{read_classifier_forward.1} parent=1 // pred_check_branch
      %230 = sbr.rel (%p228) target = $region61
    $region60: #{read_classifier_forward.1} parent=1 // pred_region
      %v231 = vld [vmem:[#allocation2] sm:$0x3]
      %v232 = vmul.f32 %v231, 0.125
      %v233 = vadd.f32 %v232, %v168
      %v234 = vld [vmem:[%s3] sm:$0xff]
      %v235 = vld [vmem:[%s3 + $0x8] sm:$0xff]
      %v236 = vld [vmem:[%s3 + $0x10] sm:$0xff]
      %v237 = vld [vmem:[%s3 + $0x18] sm:$0xff]
      %v238 = vld [vmem:[%s3 + $0x20] sm:$0xff]
      %v239 = vld [vmem:[%s3 + $0x28] sm:$0xff]
      %v240 = vld [vmem:[%s3 + $0x30] sm:$0xff]
      %v241 = vld [vmem:[%s3 + $0x38] sm:$0xff]
      %v242 = vld [vmem:[%s3 + $0x40] sm:$0xff]
      %v243 = vld [vmem:[%s3 + $0x48] sm:$0xff]
      %v244 = vld [vmem:[%s3 + $0x50] sm:$0xff]
      %v245 = vld [vmem:[%s3 + $0x58] sm:$0xff]
      %v246 = vld [vmem:[%s3 + $0x60] sm:$0xff]
      %v247 = vld [vmem:[%s3 + $0x68] sm:$0xff]
      %v248 = vld [vmem:[%s3 + $0x70] sm:$0xff]
      %v249 = vld [vmem:[%s3 + $0x78] sm:$0xff]
      %v250 = vld [vmem:[%s3 + $0x80] sm:$0xff]
      %v251 = vld [vmem:[%s3 + $0x88] sm:$0xff]
      %v252 = vld [vmem:[%s3 + $0x90] sm:$0xff]
      %v253 = vld [vmem:[%s3 + $0x98] sm:$0xff]
      %v254 = vld [vmem:[%s3 + $0xa0] sm:$0xff]
      %v255 = vld [vmem:[%s3 + $0xa8] sm:$0xff]
      %v256 = vld [vmem:[%s3 + $0xb0] sm:$0xff]
      %v257 = vld [vmem:[%s3 + $0xb8] sm:$0xff]
      %v258 = vld [vmem:[%s3 + $0xc0] sm:$0xff]
      %v259 = vld [vmem:[%s3 + $0xc8] sm:$0xff]
      %v260 = vld [vmem:[%s3 + $0xd0] sm:$0xff]
      %v261 = vld [vmem:[%s3 + $0xd8] sm:$0xff]
      %v262 = vld [vmem:[%s3 + $0xe0] sm:$0xff]
      %v263 = vld [vmem:[%s3 + $0xe8] sm:$0xff]
      %v264 = vld [vmem:[%s3 + $0xf0] sm:$0xff]
      %v265 = vld [vmem:[%s3 + $0xf8] sm:$0xff]
      %v266 = vld [vmem:[%s4] sm:$0x3]
      %v268 = vlaneseq
      %v269 = vshrl.u32 %v268, 7
      %v270 = vsub.s32 0, %v269
      %v271 = vrot.slane %v266, %v270
      %v272 = vlaneseq
      %v273 = vshrl.u32 %v272, 7
      %v274 = vsub.s32 1, %v273
      %v275 = vrot.slane %v266, %v274
      %278 = vmatprep.subr.mxu0 %v265
      %279 = vmatpush1.msra.mxu0 %v264
      %280 = vmatprep.subr.mxu0 %v263
      %281 = vmatpush1.msra.mxu0 %v262
      %282 = vmatprep.subr.mxu0 %v261
      %283 = vmatpush1.msra.mxu0 %v260
      %284 = vmatprep.subr.mxu0 %v259
      %285 = vmatpush1.msra.mxu0 %v258
      %286 = vmatprep.subr.mxu0 %v257
      %287 = vmatpush1.msra.mxu0 %v256
      %288 = vmatprep.subr.mxu0 %v255
      %289 = vmatpush1.msra.mxu0 %v254
      %290 = vmatprep.subr.mxu0 %v253
      %291 = vmatpush1.msra.mxu0 %v252
      %292 = vmatprep.subr.mxu0 %v251
      %293 = vmatpush1.msra.mxu0 %v250
      %294 = vmatprep.subr.mxu0 %v249
      %295 = vmatpush1.msra.mxu0 %v248
      %296 = vmatprep.subr.mxu0 %v247
      %297 = vmatpush1.msra.mxu0 %v246
      %298 = vmatprep.subr.mxu0 %v245
      %299 = vmatpush1.msra.mxu0 %v244
      %300 = vmatprep.subr.mxu0 %v243
      %301 = vmatpush1.msra.mxu0 %v242
      %302 = vmatprep.subr.mxu0 %v241
      %303 = vmatpush1.msra.mxu0 %v240
      %304 = vmatprep.subr.mxu0 %v239
      %305 = vmatpush1.msra.mxu0 %v238
      %306 = vmatprep.subr.mxu0 %v237
      %307 = vmatpush1.msra.mxu0 %v236
      %308 = vmatprep.subr.mxu0 %v235
      %309 = vmatpush1.msra.mxu0 %v234
      %310 = vmatprep.subr.mxu0 0.0
      %311 = vmatpush2.msra.mxu0 0.0
      %312 = vmatprep.subr.mxu0 0.0
      %313 = vmatpush2.msra.mxu0 0.0
      %314 = vmatprep.subr.mxu0 0.0
      %315 = vmatpush2.msra.mxu0 0.0
      %316 = vmatprep.subr.mxu0 0.0
      %317 = vmatpush2.msra.mxu0 0.0
      %318 = vmatprep.subr.mxu0 0.0
      %319 = vmatpush2.msra.mxu0 0.0
      %320 = vmatprep.subr.mxu0 0.0
      %321 = vmatpush2.msra.mxu0 0.0
      %322 = vmatprep.subr.mxu0 0.0
      %323 = vmatpush2.msra.mxu0 0.0
      %324 = vmatprep.subr.mxu0 0.0
      %325 = vmatpush2.msra.mxu0 0.0
      %326 = vmatprep.subr.mxu0 0.0
      %327 = vmatpush2.msra.mxu0 0.0
      %328 = vmatprep.subr.mxu0 0.0
      %329 = vmatpush2.msra.mxu0 0.0
      %330 = vmatprep.subr.mxu0 0.0
      %331 = vmatpush2.msra.mxu0 0.0
      %332 = vmatprep.subr.mxu0 0.0
      %333 = vmatpush2.msra.mxu0 0.0
      %334 = vmatprep.subr.mxu0 0.0
      %335 = vmatpush2.msra.mxu0 0.0
      %336 = vmatprep.subr.mxu0 0.0
      %337 = vmatpush2.msra.mxu0 0.0
      %338 = vmatprep.subr.mxu0 0.0
      %339 = vmatpush2.msra.mxu0 0.0
      %340 = vmatprep.subr.mxu0 0.0
      %341 = vmatpush2.msra.mxu0 0.0
      %342 = vmatprep.mubr.f32.mxu0 0.0
      %343 = vmatmul.mubr.f32.gmra.mxu0 %v233
      %v344 = vpop.f32.mrf.mxu0
      %v345 = vadd.f32 %v271, %v344
      %v346 = vpop.f32.mrf.mxu0
      %v347 = vadd.f32 %v275, %v346
      %348 = vdwg.mxu0
      %v349 = vmax.f32 %v345, 0.0
      %v350 = vmax.f32 %v347, 0.0
      %v351 = vld [vmem:[%s5] sm:$0x3]
      %v352 = vld [vmem:[%s6] sm:$0x3]
      %vm353 = vcmask 1041408
      %v354 = vsel %vm353, %v349, 0.0
      %v355 = vsel %vm353, %v350, 0.0
      %v356 = vadd.f32 %v354, %v355
      %357 = vadd.xlane.f32.xlu0 %v356
      %v358 = vpop.xlane.xlu0 %357
      %v359 = vrcp.pop 256.0
      %v360 = vmul.f32 %v358, %v359
      %v361 = vsub.f32 %v349, %v360
      %v362 = vsub.f32 %v350, %v360
      %v363 = vmul.f32 %v361, %v361
      %v364 = vmul.f32 %v362, %v362
      %v365 = vsel %vm353, %v363, 0.0
      %v366 = vsel %vm353, %v364, 0.0
      %v367 = vadd.f32 %v365, %v366
      %368 = vadd.xlane.f32.xlu0 %v367
      %v369 = vpop.xlane.xlu0 %368
      %v370 = vmul.f32 %v369, %v359
      %v371 = vadd.f32 %v370, 1e-05
      %v372 = vrsqrt.pop %v371
      %v373 = vmul.f32 %v361, %v372
      %v374 = vmul.f32 %v362, %v372
      %v376 = vlaneseq
      %v377 = vshrl.u32 %v376, 7
      %v378 = vsub.s32 0, %v377
      %v379 = vrot.slane %v351, %v378
      %v380 = vlaneseq
      %v381 = vshrl.u32 %v380, 7
      %v382 = vsub.s32 1, %v381
      %v383 = vrot.slane %v351, %v382
      %v386 = vmul.f32 %v373, %v379
      %v387 = vmul.f32 %v374, %v383
      %v389 = vlaneseq
      %v390 = vshrl.u32 %v389, 7
      %v391 = vsub.s32 0, %v390
      %v392 = vrot.slane %v352, %v391
      %v393 = vlaneseq
      %v394 = vshrl.u32 %v393, 7
      %v395 = vsub.s32 1, %v394
      %v396 = vrot.slane %v352, %v395
      %v399 = vadd.f32 %v386, %v392
      %v400 = vadd.f32 %v387, %v396
      %v401 = vld [vmem:[%s7] sm:$0xff]
      %v402 = vld [vmem:[%s7 + $0x8] sm:$0xff]
      %v403 = vld [vmem:[%s7 + $0x10] sm:$0xff]
      %v404 = vld [vmem:[%s7 + $0x18] sm:$0xff]
      %v405 = vld [vmem:[%s7 + $0x20] sm:$0xff]
      %v406 = vld [vmem:[%s7 + $0x28] sm:$0xff]
      %v407 = vld [vmem:[%s7 + $0x30] sm:$0xff]
      %v408 = vld [vmem:[%s7 + $0x38] sm:$0xff]
      %v409 = vld [vmem:[%s7 + $0x40] sm:$0xff]
      %v410 = vld [vmem:[%s7 + $0x48] sm:$0xff]
      %v411 = vld [vmem:[%s7 + $0x50] sm:$0xff]
      %v412 = vld [vmem:[%s7 + $0x58] sm:$0xff]
      %v413 = vld [vmem:[%s7 + $0x60] sm:$0xff]
      %v414 = vld [vmem:[%s7 + $0x68] sm:$0xff]
      %v415 = vld [vmem:[%s7 + $0x70] sm:$0xff]
      %v416 = vld [vmem:[%s7 + $0x78] sm:$0xff]
      %v417 = vld [vmem:[%s7 + $0x80] sm:$0xff]
      %v418 = vld [vmem:[%s7 + $0x88] sm:$0xff]
      %v419 = vld [vmem:[%s7 + $0x90] sm:$0xff]
      %v420 = vld [vmem:[%s7 + $0x98] sm:$0xff]
      %v421 = vld [vmem:[%s7 + $0xa0] sm:$0xff]
      %v422 = vld [vmem:[%s7 + $0xa8] sm:$0xff]
      %v423 = vld [vmem:[%s7 + $0xb0] sm:$0xff]
      %v424 = vld [vmem:[%s7 + $0xb8] sm:$0xff]
      %v425 = vld [vmem:[%s7 + $0xc0] sm:$0xff]
      %v426 = vld [vmem:[%s7 + $0xc8] sm:$0xff]
      %v427 = vld [vmem:[%s7 + $0xd0] sm:$0xff]
      %v428 = vld [vmem:[%s7 + $0xd8] sm:$0xff]
      %v429 = vld [vmem:[%s7 + $0xe0] sm:$0xff]
      %v430 = vld [vmem:[%s7 + $0xe8] sm:$0xff]
      %v431 = vld [vmem:[%s7 + $0xf0] sm:$0xff]
      %v432 = vld [vmem:[%s7 + $0xf8] sm:$0xff]
      %v433 = vld [vmem:[%s8] sm:$0x1]
      %v435 = vlaneseq
      %v436 = vshrl.u32 %v435, 7
      %v437 = vsub.s32 0, %v436
      %v438 = vrot.slane %v433, %v437
      %440 = vmatprep.subr.mxu0 0.0
      %441 = vmatpush1.msra.mxu0 %v416
      %442 = vmatprep.subr.mxu0 0.0
      %443 = vmatpush1.msra.mxu0 %v415
      %444 = vmatprep.subr.mxu0 0.0
      %445 = vmatpush1.msra.mxu0 %v414
      %446 = vmatprep.subr.mxu0 0.0
      %447 = vmatpush1.msra.mxu0 %v413
      %448 = vmatprep.subr.mxu0 0.0
      %449 = vmatpush1.msra.mxu0 %v412
      %450 = vmatprep.subr.mxu0 0.0
      %451 = vmatpush1.msra.mxu0 %v411
      %452 = vmatprep.subr.mxu0 0.0
      %453 = vmatpush1.msra.mxu0 %v410
      %454 = vmatprep.subr.mxu0 0.0
      %455 = vmatpush1.msra.mxu0 %v409
      %456 = vmatprep.subr.mxu0 0.0
      %457 = vmatpush1.msra.mxu0 %v408
      %458 = vmatprep.subr.mxu0 0.0
      %459 = vmatpush1.msra.mxu0 %v407
      %460 = vmatprep.subr.mxu0 0.0
      %461 = vmatpush1.msra.mxu0 %v406
      %462 = vmatprep.subr.mxu0 0.0
      %463 = vmatpush1.msra.mxu0 %v405
      %464 = vmatprep.subr.mxu0 0.0
      %465 = vmatpush1.msra.mxu0 %v404
      %466 = vmatprep.subr.mxu0 0.0
      %467 = vmatpush1.msra.mxu0 %v403
      %468 = vmatprep.subr.mxu0 0.0
      %469 = vmatpush1.msra.mxu0 %v402
      %470 = vmatprep.subr.mxu0 0.0
      %471 = vmatpush1.msra.mxu0 %v401
      %472 = vmatprep.subr.mxu0 0.0
      %473 = vmatpush2.msra.mxu0 %v432
      %474 = vmatprep.subr.mxu0 0.0
      %475 = vmatpush2.msra.mxu0 %v431
      %476 = vmatprep.subr.mxu0 0.0
      %477 = vmatpush2.msra.mxu0 %v430
      %478 = vmatprep.subr.mxu0 0.0
      %479 = vmatpush2.msra.mxu0 %v429
      %480 = vmatprep.subr.mxu0 0.0
      %481 = vmatpush2.msra.mxu0 %v428
      %482 = vmatprep.subr.mxu0 0.0
      %483 = vmatpush2.msra.mxu0 %v427
      %484 = vmatprep.subr.mxu0 0.0
      %485 = vmatpush2.msra.mxu0 %v426
      %486 = vmatprep.subr.mxu0 0.0
      %487 = vmatpush2.msra.mxu0 %v425
      %488 = vmatprep.subr.mxu0 0.0
      %489 = vmatpush2.msra.mxu0 %v424
      %490 = vmatprep.subr.mxu0 0.0
      %491 = vmatpush2.msra.mxu0 %v423
      %492 = vmatprep.subr.mxu0 0.0
      %493 = vmatpush2.msra.mxu0 %v422
      %494 = vmatprep.subr.mxu0 0.0
      %495 = vmatpush2.msra.mxu0 %v421
      %496 = vmatprep.subr.mxu0 0.0
      %497 = vmatpush2.msra.mxu0 %v420
      %498 = vmatprep.subr.mxu0 0.0
      %499 = vmatpush2.msra.mxu0 %v419
      %500 = vmatprep.subr.mxu0 0.0
      %501 = vmatpush2.msra.mxu0 %v418
      %502 = vmatprep.subr.mxu0 0.0
      %503 = vmatpush2.msra.mxu0 %v417
      %504 = vmatprep.mubr.f32.mxu0 %v400
      %505 = vmatmul.mubr.f32.gmra.mxu0 %v399
      %v506 = vpop.f32.mrf.mxu0
      %v507 = vadd.f32 %v438, %v506
      %v508 = vpop.f32.mrf.mxu0
      %509 = vdwg.mxu0
      %v510 = vmax.f32 %v507, 0.0
      %v511 = vld [vmem:[%s9] sm:$0x1]
      %v512 = vld [vmem:[%s10] sm:$0x1]
      %vm513 = vcmask 517120
      %v514 = vsel %vm513, %v510, 0.0
      %515 = vadd.xlane.f32.xlu0 %v514
      %v516 = vpop.xlane.xlu0 %515
      %v517 = vrcp.pop 64.0
      %v518 = vmul.f32 %v516, %v517
      %v519 = vsub.f32 %v510, %v518
      %v520 = vmul.f32 %v519, %v519
      %v521 = vsel %vm513, %v520, 0.0
      %522 = vadd.xlane.f32.xlu0 %v521
      %v523 = vpop.xlane.xlu0 %522
      %v524 = vmul.f32 %v523, %v517
      %v525 = vadd.f32 %v524, 1e-05
      %v526 = vrsqrt.pop %v525
      %v527 = vmul.f32 %v519, %v526
      %v529 = vlaneseq
      %v530 = vshrl.u32 %v529, 7
      %v531 = vsub.s32 0, %v530
      %v532 = vrot.slane %v511, %v531
      %v534 = vmul.f32 %v527, %v532
      %v536 = vlaneseq
      %v537 = vshrl.u32 %v536, 7
      %v538 = vsub.s32 0, %v537
      %v539 = vrot.slane %v512, %v538
      %v541 = vadd.f32 %v534, %v539
      %v542 = vld [vmem:[%s11] sm:$0xff]
      %v543 = vld [vmem:[%s11 + $0x8] sm:$0xff]
      %v544 = vld [vmem:[%s11 + $0x10] sm:$0xff]
      %v545 = vld [vmem:[%s11 + $0x18] sm:$0xff]
      %v546 = vld [vmem:[%s11 + $0x20] sm:$0xff]
      %v547 = vld [vmem:[%s11 + $0x28] sm:$0xff]
      %v548 = vld [vmem:[%s11 + $0x30] sm:$0xff]
      %v549 = vld [vmem:[%s11 + $0x38] sm:$0xff]
      %v550 = vld [vmem:[%s12] sm:$0x1]
      %v552 = vlaneseq
      %v553 = vshrl.u32 %v552, 7
      %v554 = vsub.s32 0, %v553
      %v555 = vrot.slane %v550, %v554
      %vm557 = vcmask 523264
      %v559 = vsel %vm557, %v541, 0
      %561 = vmatprep.subr.mxu0 0.0
      %562 = vmatpush1.msra.mxu0 0.0
      %563 = vmatprep.subr.mxu0 0.0
      %564 = vmatpush1.msra.mxu0 0.0
      %565 = vmatprep.subr.mxu0 0.0
      %566 = vmatpush1.msra.mxu0 0.0
      %567 = vmatprep.subr.mxu0 0.0
      %568 = vmatpush1.msra.mxu0 0.0
      %569 = vmatprep.subr.mxu0 0.0
      %570 = vmatpush1.msra.mxu0 0.0
      %571 = vmatprep.subr.mxu0 0.0
      %572 = vmatpush1.msra.mxu0 0.0
      %573 = vmatprep.subr.mxu0 0.0
      %574 = vmatpush1.msra.mxu0 0.0
      %575 = vmatprep.subr.mxu0 0.0
      %576 = vmatpush1.msra.mxu0 0.0
      %577 = vmatprep.subr.mxu0 0.0
      %578 = vmatpush1.msra.mxu0 %v549
      %579 = vmatprep.subr.mxu0 0.0
      %580 = vmatpush1.msra.mxu0 %v548
      %581 = vmatprep.subr.mxu0 0.0
      %582 = vmatpush1.msra.mxu0 %v547
      %583 = vmatprep.subr.mxu0 0.0
      %584 = vmatpush1.msra.mxu0 %v546
      %585 = vmatprep.subr.mxu0 0.0
      %586 = vmatpush1.msra.mxu0 %v545
      %587 = vmatprep.subr.mxu0 0.0
      %588 = vmatpush1.msra.mxu0 %v544
      %589 = vmatprep.subr.mxu0 0.0
      %590 = vmatpush1.msra.mxu0 %v543
      %591 = vmatprep.subr.mxu0 0.0
      %592 = vmatpush1.msra.mxu0 %v542
      %593 = vmatprep.subr.mxu0 0.0
      %594 = vmatpush2.msra.mxu0 0.0
      %595 = vmatprep.subr.mxu0 0.0
      %596 = vmatpush2.msra.mxu0 0.0
      %597 = vmatprep.subr.mxu0 0.0
      %598 = vmatpush2.msra.mxu0 0.0
      %599 = vmatprep.subr.mxu0 0.0
      %600 = vmatpush2.msra.mxu0 0.0
      %601 = vmatprep.subr.mxu0 0.0
      %602 = vmatpush2.msra.mxu0 0.0
      %603 = vmatprep.subr.mxu0 0.0
      %604 = vmatpush2.msra.mxu0 0.0
      %605 = vmatprep.subr.mxu0 0.0
      %606 = vmatpush2.msra.mxu0 0.0
      %607 = vmatprep.subr.mxu0 0.0
      %608 = vmatpush2.msra.mxu0 0.0
      %609 = vmatprep.subr.mxu0 0.0
      %610 = vmatpush2.msra.mxu0 0.0
      %611 = vmatprep.subr.mxu0 0.0
      %612 = vmatpush2.msra.mxu0 0.0
      %613 = vmatprep.subr.mxu0 0.0
      %614 = vmatpush2.msra.mxu0 0.0
      %615 = vmatprep.subr.mxu0 0.0
      %616 = vmatpush2.msra.mxu0 0.0
      %617 = vmatprep.subr.mxu0 0.0
      %618 = vmatpush2.msra.mxu0 0.0
      %619 = vmatprep.subr.mxu0 0.0
      %620 = vmatpush2.msra.mxu0 0.0
      %621 = vmatprep.subr.mxu0 0.0
      %622 = vmatpush2.msra.mxu0 0.0
      %623 = vmatprep.subr.mxu0 0.0
      %624 = vmatpush2.msra.mxu0 0.0
      %625 = vmatprep.mubr.f32.mxu0 0.0
      %626 = vmatmul.mubr.f32.gmra.mxu0 %v559
      %v627 = vpop.f32.mrf.mxu0
      %v628 = vadd.f32 %v555, %v627
      %v629 = vpop.f32.mrf.mxu0
      %630 = vdwg.mxu0
      %631 = vst [vmem:[#allocation5] sm:$0x3] %v628
      %v632 = vlaneseq
      %v633 = vand.u32 %v632, 127
      %vm634 = vcmp.lt.s32.totalorder %v633, 2
      %v635 = vsel %vm634, %v628, -inf
      %v636 = vsel %vm353, %v635, -inf
      %637 = vmax.xlane.f32.xlu0 %v636
      %v638 = vpop.xlane.xlu0 %637
      %v639 = vsub.f32 %v635, %v638
      %v640 = vmul.f32 %v639, 1.442695
      %v641 = vpow.pop %v640
      %v642 = vsel %vm634, %v641, 0.0
      %v643 = vsel %vm353, %v642, 0.0
      %644 = vadd.xlane.f32.xlu0 %v643
      %v645 = vpop.xlane.xlu0 %644
      %v646 = vrcp.pop %v645
      %v647 = vmul.f32 %v642, %v646
      %648 = vst [vmem:[#allocation7] sm:$0x3] %v647
    $region61: #{read_classifier_forward.1} parent=1 // pred_fallthru
      _
    // Predicated region
    $region62: #{read_classifier_forward.1} parent=1 // pred_check
      _
    $region63: #{read_classifier_forward.1} parent=1 // pred_check_branch
      %650 = sbr.rel (0) target = $region65
    $region64: #{read_classifier_forward.1} parent=1 // pred_region
      %s652 = ssub.s32 128, 128
      %653 = vsyncadd [#allocation4], %s652
      %s654 = sshll.u32 [#allocation3], 4
      %s655 = int_to_ptr.vmem [resolvable:$true] %s654
      %660 = dma.vmem_to_hbm [thread:$0]  %s655, 128, %s13, [#allocation4], 64, 64, 4
    $region65: #{read_classifier_forward.1} parent=1 // pred_fallthru
      _
    // Predicated region
    $region66: #{read_classifier_forward.1} parent=1 // pred_check
      _
    $region67: #{read_classifier_forward.1} parent=1 // pred_check_branch
      %662 = sbr.rel (0) target = $region69
    $region68: #{read_classifier_forward.1} parent=1 // pred_region
      %s664 = ssub.s32 32, 32
      %665 = vsyncadd [#allocation6], %s664
      %s667 = sshll.u32 [#allocation5], 4
      %s668 = int_to_ptr.vmem [resolvable:$true] %s667
      %670 = dma.vmem_to_hbm [thread:$0]  %s668, 32, %s14, [#allocation6]
    $region69: #{read_classifier_forward.1} parent=1 // pred_fallthru
      _
    // Predicated region
    $region70: #{read_classifier_forward.1} parent=1 // pred_check
      _
    $region71: #{read_classifier_forward.1} parent=1 // pred_check_branch
      %672 = sbr.rel (0) target = $region73
    $region72: #{read_classifier_forward.1} parent=1 // pred_region
      %s674 = ssub.s32 32, 32
      %675 = vsyncadd [#allocation6], %s674
      %s677 = sshll.u32 [#allocation7], 4
      %s678 = int_to_ptr.vmem [resolvable:$true] %s677
      %680 = dma.vmem_to_hbm [thread:$0]  %s678, 32, %s15, [#allocation6]
    $region73: #{read_classifier_forward.1} parent=1 // pred_fallthru
      _
    // Predicated region
    $region74: #{read_classifier_forward.1} parent=1 // pred_check
      _
    $region75: #{read_classifier_forward.1} parent=1 // pred_check_branch
      %682 = sbr.rel (0) target = $region77
    $region76: #{read_classifier_forward.1} parent=1 // pred_region
      %683 = dma.done [#allocation4], 128
    $region77: #{read_classifier_forward.1} parent=1 // pred_fallthru
      _
    // Predicated region
    $region78: #{read_classifier_forward.1} parent=1 // pred_check
      _
    $region79: #{read_classifier_forward.1} parent=1 // pred_check_branch
      %685 = sbr.rel (0) target = $region81
    $region80: #{read_classifier_forward.1} parent=1 // pred_region
      %686 = dma.done [#allocation6], 32
    $region81: #{read_classifier_forward.1} parent=1 // pred_fallthru
      _
    // Predicated region
    $region82: #{read_classifier_forward.1} parent=1 // pred_check
      _
    $region83: #{read_classifier_forward.1} parent=1 // pred_check_branch
      %688 = sbr.rel (0) target = $region85
    $region84: #{read_classifier_forward.1} parent=1 // pred_region
      %689 = dma.done [#allocation6], 32
    $region85: #{read_classifier_forward.1} parent=1 // pred_fallthru
      _
    %690 = vsyncpa [#allocation4], 1
    %691 = vsyncpa [#allocation6], 1

</llo_original>
